<compile_context>
chip_gen: v7x
topology: tpu7x:2x2x1
jax: 0.10.0
libtpu: 0.0.40
codegen_flags: <defaults>
</compile_context>

<pallas_src>
import functools

import jax
import jax.numpy as jnp
from jax import lax
from jax.experimental import pallas as pl
from jax.experimental.pallas import tpu as pltpu

_LANE = 128
_SUBLANE = 8


def _dice_kernel(out_ref, tgt_ref, loss_ref, acc_i_ref, acc_u_ref, *,
                 total, tile_rows, needs_mask):
    i = pl.program_id(0)

    @pl.when(i == 0)
    def _():
        acc_i_ref[...] = jnp.zeros_like(acc_i_ref)
        acc_u_ref[...] = jnp.zeros_like(acc_u_ref)

    logits = out_ref[...].astype(jnp.float32)
    tgt = tgt_ref[...].astype(jnp.float32)
    pred = jax.nn.sigmoid(logits)     # evaluated exactly once per element (EUP)

    inter = pred * tgt                # contribution to intersection
    union = pred + tgt                # contribution to union

    if needs_mask:
        # Mask out padded / out-of-bounds elements of the (partial) last tile.
        # `total` is a static Python int, so this code only exists when needed.
        row_ids = lax.broadcasted_iota(jnp.int32, (tile_rows, _LANE), 0)
        col_ids = lax.broadcasted_iota(jnp.int32, (tile_rows, _LANE), 1)
        gidx = (i * tile_rows + row_ids) * _LANE + col_ids
        valid = gidx < total
        inter = jnp.where(valid, inter, 0.0)
        union = jnp.where(valid, union, 0.0)

    # Reduce (tile_rows, 128) -> (8, 128) with pure VPU adds and accumulate
    # into the resident VMEM accumulators (no per-step cross-lane reduction).
    n_groups = tile_rows // _SUBLANE
    acc_i_ref[...] += inter.reshape(n_groups, _SUBLANE, _LANE).sum(axis=0)
    acc_u_ref[...] += union.reshape(n_groups, _SUBLANE, _LANE).sum(axis=0)

    @pl.when(i == pl.num_programs(0) - 1)
    def _():
        intersection = jnp.sum(acc_i_ref[...])
        union_total = jnp.sum(acc_u_ref[...]) + 1e-07
        loss_ref[0] = 1.0 - 2.0 * intersection / union_total


@functools.partial(jax.jit, static_argnames=("tile_rows",))
def dice_loss(output, target, *, tile_rows=1024):
    assert output.shape == target.shape
    total = output.size

    # Keep native dtype on the wire; upcast happens in-kernel.
    flat_o = output.reshape(-1)
    flat_t = target.reshape(-1)

    # Only pad in the rare case the element count is not lane-divisible
    # (pad values are masked out in-kernel, so zeros are fine).
    pad = (-total) % _LANE
    if pad:
        flat_o = jnp.pad(flat_o, (0, pad))
        flat_t = jnp.pad(flat_t, (0, pad))

    rows = flat_o.size // _LANE
    o2 = flat_o.reshape(rows, _LANE)
    t2 = flat_t.reshape(rows, _LANE)

    # Tile size: multiple of the 8-row sublane, capped at the (rounded) row
    # count so tiny inputs don't allocate huge blocks.
    tile_rows = max(_SUBLANE, (tile_rows // _SUBLANE) * _SUBLANE)
    rows_rounded = ((rows + _SUBLANE - 1) // _SUBLANE) * _SUBLANE
    tile_rows_eff = min(tile_rows, rows_rounded)

    grid = (pl.cdiv(rows, tile_rows_eff),)
    covered = grid[0] * tile_rows_eff * _LANE
    needs_mask = covered != total      # static: partial last block or padding

    kernel = functools.partial(
        _dice_kernel,
        total=total,
        tile_rows=tile_rows_eff,
        needs_mask=needs_mask,
    )

    loss = pl.pallas_call(
        kernel,
        out_shape=jax.ShapeDtypeStruct((1,), jnp.float32),
        grid=grid,
        in_specs=[
            pl.BlockSpec((tile_rows_eff, _LANE), lambda i: (i, 0)),
            pl.BlockSpec((tile_rows_eff, _LANE), lambda i: (i, 0)),
        ],
        out_specs=pl.BlockSpec(memory_space=pltpu.SMEM),
        scratch_shapes=[
            pltpu.VMEM((_SUBLANE, _LANE), jnp.float32),  # sum(p * t) partials
            pltpu.VMEM((_SUBLANE, _LANE), jnp.float32),  # sum(p + t) partials
        ],
        compiler_params=pltpu.CompilerParams(
            dimension_semantics=("arbitrary",)),
    )(o2, t2)

    return loss[0]


def _dice_loss_ref(output, target):
    p = jax.nn.sigmoid(output.astype(jnp.float32))
    t = target.astype(jnp.float32)
    inter = jnp.sum(p * t)
    union = jnp.sum(p) + jnp.sum(t) + 1e-07
    return 1.0 - 2.0 * inter / union


if __name__ == "__main__":
    key = jax.random.PRNGKey(0)
    k1, k2 = jax.random.split(key)

    # NCHW, like the PyTorch module's conv outputs.
    N, C, H, W = 2, 4, 16, 16
    output = jax.random.normal(k1, (N, C, H, W), dtype=jnp.float32)
    target = (jax.random.uniform(k2, (N, C, H, W)) > 0.5).astype(jnp.float32)

    loss = dice_loss(output, target)
    jax.block_until_ready(loss)

    ref = _dice_loss_ref(output, target)
    assert jnp.allclose(loss, ref, atol=1e-5, rtol=1e-5), (loss, ref)

    # Also exercise a shape whose last block is partial (masking path).
    out2 = jax.random.normal(k1, (3, 5, 17, 16), dtype=jnp.float32)
    tgt2 = (jax.random.uniform(k2, (3, 5, 17, 16)) > 0.5).astype(jnp.float32)
    loss2 = dice_loss(out2, tgt2, tile_rows=16)
    jax.block_until_ready(loss2)
    ref2 = _dice_loss_ref(out2, tgt2)
    assert jnp.allclose(loss2, ref2, atol=1e-5, rtol=1e-5), (loss2, ref2)

    print("KERNEL_OK")
</pallas_src>

<mosaic_0001>
module attributes {stable_mosaic.version = 11 : i64} {
  func.func @_dice_kernel(%arg0: i32, %arg1: memref<16x128xf32, #tpu.memory_space<vmem>>, %arg2: memref<16x128xf32, #tpu.memory_space<vmem>>, %arg3: memref<1xf32, #tpu.memory_space<smem>>, %arg4: memref<8x128xf32, #tpu.memory_space<vmem>>, %arg5: memref<8x128xf32, #tpu.memory_space<vmem>>) attributes {dimension_semantics = [#tpu.dimension_semantics<arbitrary>], iteration_bounds = array<i64: 1>, scalar_prefetch = 0 : i64, scratch_operands = 2 : i64, tpu.core_type = #tpu.core_type<tc>, window_params = [{transform_indices = @transform_0, window_bounds = array<i64: 16, 128>}, {transform_indices = @transform_1, window_bounds = array<i64: 16, 128>}, {transform_indices = @transform_2, window_bounds = array<i64: 1>}]} {
    %c0_i32 = arith.constant 0 : i32
    %0 = arith.cmpi eq, %arg0, %c0_i32 : i32
    %1 = arith.extui %0 : i1 to i32
    %c0_i32_0 = arith.constant 0 : i32
    %2 = arith.cmpi ne, %1, %c0_i32_0 : i32
    scf.if %2 {
      %cst_16 = arith.constant 0.000000e+00 : f32
      %25 = vector.broadcast %cst_16 : f32 to vector<8x128xf32>
      %c0_17 = arith.constant 0 : index
      %c0_18 = arith.constant 0 : index
      %26 = vector.load %arg4[%c0_17, %c0_18] : memref<8x128xf32, #tpu.memory_space<vmem>>, vector<8x128xf32>
      tpu.vector_store %arg4[%c0_17, %c0_18], %25 {strides = array<i32>} : memref<8x128xf32, #tpu.memory_space<vmem>>, vector<8x128xf32>,
      %cst_19 = arith.constant 0.000000e+00 : f32
      %27 = vector.broadcast %cst_19 : f32 to vector<8x128xf32>
      %c0_20 = arith.constant 0 : index
      %c0_21 = arith.constant 0 : index
      %28 = vector.load %arg5[%c0_20, %c0_21] : memref<8x128xf32, #tpu.memory_space<vmem>>, vector<8x128xf32>
      tpu.vector_store %arg5[%c0_20, %c0_21], %27 {strides = array<i32>} : memref<8x128xf32, #tpu.memory_space<vmem>>, vector<8x128xf32>,
    } else {
    }
    %c0 = arith.constant 0 : index
    %c0_1 = arith.constant 0 : index
    %3 = vector.load %arg1[%c0, %c0_1] : memref<16x128xf32, #tpu.memory_space<vmem>>, vector<16x128xf32>
    %c0_2 = arith.constant 0 : index
    %c0_3 = arith.constant 0 : index
    %4 = vector.load %arg2[%c0_2, %c0_3] : memref<16x128xf32, #tpu.memory_space<vmem>>, vector<16x128xf32>
    %5 = arith.negf %3 : vector<16x128xf32>
    %6 = math.exp %5 : vector<16x128xf32>
    %cst = arith.constant 1.000000e+00 : f32
    %7 = vector.broadcast %cst : f32 to vector<16x128xf32>
    %8 = arith.addf %7, %6 : vector<16x128xf32>
    %9 = arith.divf %7, %8 : vector<16x128xf32>
    %10 = arith.mulf %9, %4 : vector<16x128xf32>
    %11 = arith.addf %9, %4 : vector<16x128xf32>
    %c0_4 = arith.constant 0 : index
    %c0_5 = arith.constant 0 : index
    %12 = vector.load %arg4[%c0_4, %c0_5] : memref<8x128xf32, #tpu.memory_space<vmem>>, vector<8x128xf32>
    %13 = vector.shape_cast %10 : vector<16x128xf32> to vector<2x8x128xf32>
    %cst_6 = arith.constant dense<0.000000e+00> : vector<8x128xf32>
    %14 = vector.multi_reduction <add>, %13, %cst_6 [0] : vector<2x8x128xf32> to vector<8x128xf32>
    %15 = arith.addf %12, %14 : vector<8x128xf32>
    %c0_7 = arith.constant 0 : index
    %c0_8 = arith.constant 0 : index
    %16 = vector.load %arg4[%c0_7, %c0_8] : memref<8x128xf32, #tpu.memory_space<vmem>>, vector<8x128xf32>
    tpu.vector_store %arg4[%c0_7, %c0_8], %15 {strides = array<i32>} : memref<8x128xf32, #tpu.memory_space<vmem>>, vector<8x128xf32>,
    %c0_9 = arith.constant 0 : index
    %c0_10 = arith.constant 0 : index
    %17 = vector.load %arg5[%c0_9, %c0_10] : memref<8x128xf32, #tpu.memory_space<vmem>>, vector<8x128xf32>
    %18 = vector.shape_cast %11 : vector<16x128xf32> to vector<2x8x128xf32>
    %cst_11 = arith.constant dense<0.000000e+00> : vector<8x128xf32>
    %19 = vector.multi_reduction <add>, %18, %cst_11 [0] : vector<2x8x128xf32> to vector<8x128xf32>
    %20 = arith.addf %17, %19 : vector<8x128xf32>
    %c0_12 = arith.constant 0 : index
    %c0_13 = arith.constant 0 : index
    %21 = vector.load %arg5[%c0_12, %c0_13] : memref<8x128xf32, #tpu.memory_space<vmem>>, vector<8x128xf32>
    tpu.vector_store %arg5[%c0_12, %c0_13], %20 {strides = array<i32>} : memref<8x128xf32, #tpu.memory_space<vmem>>, vector<8x128xf32>,
    %c0_i32_14 = arith.constant 0 : i32
    %22 = arith.cmpi eq, %arg0, %c0_i32_14 : i32
    %23 = arith.extui %22 : i1 to i32
    %c0_i32_15 = arith.constant 0 : i32
    %24 = arith.cmpi ne, %23, %c0_i32_15 : i32
    scf.if %24 {
      %c0_16 = arith.constant 0 : index
      %c0_17 = arith.constant 0 : index
      %25 = vector.load %arg4[%c0_16, %c0_17] : memref<8x128xf32, #tpu.memory_space<vmem>>, vector<8x128xf32>
      %26 = vector.shape_cast %25 : vector<8x128xf32> to vector<1x8x128xf32>
      %cst_18 = arith.constant dense<0.000000e+00> : vector<1xf32>
      %27 = vector.multi_reduction <add>, %26, %cst_18 [1, 2] : vector<1x8x128xf32> to vector<1xf32>
      %28 = vector.shape_cast %27 : vector<1xf32> to vector<1x1x1xf32>
      %29 = vector.extract %28[0, 0, 0] : f32 from vector<1x1x1xf32>
      %c0_19 = arith.constant 0 : index
      %c0_20 = arith.constant 0 : index
      %30 = vector.load %arg5[%c0_19, %c0_20] : memref<8x128xf32, #tpu.memory_space<vmem>>, vector<8x128xf32>
      %31 = vector.shape_cast %30 : vector<8x128xf32> to vector<1x8x128xf32>
      %cst_21 = arith.constant dense<0.000000e+00> : vector<1xf32>
      %32 = vector.multi_reduction <add>, %31, %cst_21 [1, 2] : vector<1x8x128xf32> to vector<1xf32>
      %33 = vector.shape_cast %32 : vector<1xf32> to vector<1x1x1xf32>
      %34 = vector.extract %33[0, 0, 0] : f32 from vector<1x1x1xf32>
      %cst_22 = arith.constant 1.000000e-07 : f32
      %35 = arith.addf %34, %cst_22 : f32
      %cst_23 = arith.constant 2.000000e+00 : f32
      %36 = arith.mulf %cst_23, %29 : f32
      %37 = arith.divf %36, %35 : f32
      %cst_24 = arith.constant 1.000000e+00 : f32
      %38 = arith.subf %cst_24, %37 : f32
      %c0_25 = arith.constant 0 : index
      %39 = memref.load %arg3[%c0_25] : memref<1xf32, #tpu.memory_space<smem>>
      memref.store %38, %arg3[%c0_25] : memref<1xf32, #tpu.memory_space<smem>>
    } else {
    }
    return
  }
  func.func @transform_0(%arg0: i32) -> (i32, i32) {
    %c0_i32 = arith.constant 0 : i32
    %c0_i32_0 = arith.constant 0 : i32
    return %arg0, %c0_i32 : i32, i32
  }
  func.func @transform_1(%arg0: i32) -> (i32, i32) {
    %c0_i32 = arith.constant 0 : i32
    %c0_i32_0 = arith.constant 0 : i32
    return %arg0, %c0_i32 : i32, i32
  }
  func.func @transform_2(%arg0: i32) -> i32 {
    %c0_i32 = arith.constant 0 : i32
    %c0_i32_0 = arith.constant 0 : i32
    return %c0_i32 : i32
  }
}

</mosaic_0001>

<llo_original>
// kernel: dice_loss.1
$region0: #{dice_loss.1}
  #allocation0 [shape = 'u32[]', space=smem, size = 0x4, offset = 0x4, fixed_abs, tag = 'smem constant byte address 0x4 - core index']
  #allocation1 [shape = 'u32[144,128]{1,0:T(1,128)}', space=vmem, size = 0x12000, scoped, tag = 'internal scratch']
  #allocation2 [shape = 'f32[8,128]{1,0:T(8,128)}', space=vmem, size = 0x1000, scoped, tag = 'scratch operand']
  #allocation3 [shape = 'f32[8,128]{1,0:T(8,128)}', space=vmem, size = 0x1000, scoped, tag = 'scratch operand']
  %s0 = inlined_call_operand.vmem [shape: f32[16,128], index: 0, kind: input, shape index: {}]
  %s1 = inlined_call_operand.vmem [shape: f32[16,128], index: 1, kind: input, shape index: {}]
  %s2 = inlined_call_operand.hbm [shape: f32[1], index: 2, kind: output, shape index: {}]
  %s3 = sld [smem:[#allocation0]]
  $region26: #{dice_loss.1} parent=0
    _
  %s5 = ssub.s32 1, %s3
  %s6 = scalar_select 0, %s5, %s3
  $region1: #{dice_loss.1} parent=0
    #allocation4 [shape = 'u8[512]{0}', space=smem, size = 0x200, scoped, tag = 'output window, operand 0, single buffered']
    #allocation5 [shape = 's32[1]{0}', space=sflag, size = 0x4, scoped, tag = 'scoped memory for dice_loss.1']
    %7 = vsyncpa [#allocation5], 0
    // Predicated region
    $region2: #{dice_loss.1} parent=1 // pred_check
      _
    $region3: #{dice_loss.1} parent=1 // pred_check_branch
      %9 = sbr.rel (0) target = $region5
    $region4: #{dice_loss.1} parent=1 // pred_region
      _
    $region5: #{dice_loss.1} parent=1 // pred_fallthru
      _
    // Predicated region
    $region6: #{dice_loss.1} parent=1 // pred_check
      _
    $region7: #{dice_loss.1} parent=1 // pred_check_branch
      %11 = sbr.rel (0) target = $region9
    $region8: #{dice_loss.1} parent=1 // pred_region
      _
    $region9: #{dice_loss.1} parent=1 // pred_fallthru
      _
    %p12 = scmp.eq.s32.totalorder 0, 0
    // Predicated region
    $region10: #{dice_loss.1} parent=1 // pred_check
      %p13 = pneg %p12
    $region11: #{dice_loss.1} parent=1 // pred_check_branch
      %15 = sbr.rel (%p13) target = $region13
    $region12: #{dice_loss.1} parent=1 // pred_region
      %16 = vst [vmem:[#allocation2] sm:$0xff] 0.0
      %17 = vst [vmem:[#allocation3] sm:$0xff] 0.0
    $region13: #{dice_loss.1} parent=1 // pred_fallthru
      _
    %v18 = vld [vmem:[%s0] sm:$0xff]
    %v19 = vld [vmem:[%s0 + $0x8] sm:$0xff]
    %v20 = vld [vmem:[%s1] sm:$0xff]
    %v21 = vld [vmem:[%s1 + $0x8] sm:$0xff]
    %v22 = vxor.u32 %v18, 2147483648
    %v23 = vxor.u32 %v19, 2147483648
    %v24 = vmul.f32 %v22, 1.442695
    %v25 = vpow.pop %v24
    %v26 = vmul.f32 %v23, 1.442695
    %v27 = vpow.pop %v26
    %v28 = vadd.f32 %v25, 1.0
    %v29 = vadd.f32 %v27, 1.0
    %v30 = vrcp.pop %v28
    %v31 = vmul.f32 1.0, %v30
    %v32 = vrcp.pop %v29
    %v33 = vmul.f32 1.0, %v32
    %v34 = vmul.f32 %v31, %v20
    %v35 = vmul.f32 %v33, %v21
    %v36 = vadd.f32 %v31, %v20
    %v37 = vadd.f32 %v33, %v21
    %v38 = vld [vmem:[#allocation2] sm:$0xff]
    %v39 = vadd.f32 %v34, %v35
    %v40 = vadd.f32 %v38, %v39
    %41 = vst [vmem:[#allocation2] sm:$0xff] %v40
    %v42 = vld [vmem:[#allocation3] sm:$0xff]
    %v43 = vadd.f32 %v36, %v37
    %v44 = vadd.f32 %v42, %v43
    %45 = vst [vmem:[#allocation3] sm:$0xff] %v44
    // Predicated region
    $region14: #{dice_loss.1} parent=1 // pred_check
      %p46 = pneg %p12
    $region15: #{dice_loss.1} parent=1 // pred_check_branch
      %48 = sbr.rel (%p46) target = $region17
    $region16: #{dice_loss.1} parent=1 // pred_region
      %v49 = vld [vmem:[#allocation2] sm:$0xff]
      %50 = vadd.xlane.f32.xlu0 %v49
      %v51 = vpop.xlane.xlu0 %50
      %v52 = vrot.slane %v51, 4
      %v53 = vadd.f32 %v51, %v52
      %v54 = vrot.slane %v53, 2
      %v55 = vadd.f32 %v53, %v54
      %v56 = vrot.slane %v55, 1
      %v57 = vadd.f32 %v55, %v56
      %s58 = vtos %v57
      %v59 = vld [vmem:[#allocation3] sm:$0xff]
      %60 = vadd.xlane.f32.xlu0 %v59
      %v61 = vpop.xlane.xlu0 %60
      %v62 = vrot.slane %v61, 4
      %v63 = vadd.f32 %v61, %v62
      %v64 = vrot.slane %v63, 2
      %v65 = vadd.f32 %v63, %v64
      %v66 = vrot.slane %v65, 1
      %v67 = vadd.f32 %v65, %v66
      %s68 = vtos %v67
      %s69 = sadd.f32 %s68, 1e-07
      %s70 = smul.f32 %s58, 2.0
      %v71 = vstv %s69
      %v72 = vrcp.pop %v71
      %s73 = vtos %v72
      %s74 = smul.f32 %s70, %s73
      %s75 = ssub.f32 1.0, %s74
      %s76 = scalar_lea.smem [#allocation4], 0
      %77 = sst [smem:[%s76]] %s75
    $region17: #{dice_loss.1} parent=1 // pred_fallthru
      _
    // Predicated region
    $region18: #{dice_loss.1} parent=1 // pred_check
      _
    $region19: #{dice_loss.1} parent=1 // pred_check_branch
      %79 = sbr.rel (0) target = $region21
    $region20: #{dice_loss.1} parent=1 // pred_region
      %s81 = ssub.s32 16, 16
      %82 = vsyncadd [#allocation5], %s81
      %85 = dma.smem_to_hbm [#allocation4], 16, %s2, [#allocation5]
    $region21: #{dice_loss.1} parent=1 // pred_fallthru
      _
    // Predicated region
    $region22: #{dice_loss.1} parent=1 // pred_check
      _
    $region23: #{dice_loss.1} parent=1 // pred_check_branch
      %87 = sbr.rel (0) target = $region25
    $region24: #{dice_loss.1} parent=1 // pred_region
      %88 = dma.done [#allocation5], 16
    $region25: #{dice_loss.1} parent=1 // pred_fallthru
      _
    %89 = sfence
    %90 = vsyncpa [#allocation5], 1

</llo_original>
